<compile_context>
chip_gen: v7x
topology: tpu7x:2x2x1
jax: 0.10.0
libtpu: 0.0.40
codegen_flags: <defaults>
</compile_context>

<pallas_src>
import jax
import jax.numpy as jnp
from jax.experimental import pallas as pl
from jax.experimental.pallas import tpu as pltpu


def _linear_kernel(x_ref, w_ref, b_ref, o_ref):
    # x_ref: (B, K)  w_ref: (K, N_pad)  b_ref: (1, N_pad)  o_ref: (B, N_pad)
    acc = jnp.dot(x_ref[...], w_ref[...], preferred_element_type=jnp.float32)
    o_ref[...] = (acc + b_ref[...]).astype(o_ref.dtype)


def make_my_linear(weight, bias):
    """One-time init. weight: (N, K) PyTorch layout; bias: (N,).

    Pads N up to a multiple of 128 and caches the weight in (K, N_pad) layout
    plus the bias as (1, N_pad), so the per-call forward is a single
    grid-less pallas_call (one contiguous weight DMA, one MXU matmul).
    Returns a jitted forward(x) -> (B, N).
    """
    N, K = weight.shape
    assert bias.shape == (N,)
    N_pad = pl.cdiv(N, 128) * 128

    # Init-time (eager, once): pad + transpose the weight, pad the bias.
    w_t = jnp.zeros((K, N_pad), weight.dtype).at[:, :N].set(weight.T)
    b2d = jnp.zeros((1, N_pad), bias.dtype).at[:, :N].set(bias)

    def forward(x):
        B, Kx = x.shape
        assert Kx == K
        cost = pl.CostEstimate(
            flops=2 * B * K * N_pad,
            bytes_accessed=4 * (B * K + K * N_pad + N_pad + B * N_pad),
            transcendentals=0,
        )
        out = pl.pallas_call(
            _linear_kernel,
            out_shape=jax.ShapeDtypeStruct((B, N_pad), x.dtype),
            # No grid: whole operands as single VMEM-resident blocks
            # (~1.8 MiB total -> well under scoped VMEM on v5e/v6e/v7x).
            in_specs=[
                pl.BlockSpec((B, K), lambda: (0, 0)),        # activations
                pl.BlockSpec((K, N_pad), lambda: (0, 0)),    # cached transposed weight
                pl.BlockSpec((1, N_pad), lambda: (0, 0)),    # cached padded bias
            ],
            out_specs=pl.BlockSpec((B, N_pad), lambda: (0, 0)),
            cost_estimate=cost,
        )(x, w_t, b2d)
        # Padded columns are exactly zero (zero weight, zero bias); slice back
        # to N so the output matches the PyTorch module exactly.
        return out[:, :N]

    return jax.jit(forward)


# TODO(synk): label_map segmented-max path (torch.split_with_sizes + per-segment
# max) is not implemented; the module defaults to label_map=None, where forward
# is exactly the linear layer above. The nn.Softmax member is never applied in
# forward(), so it is intentionally omitted as well.


if __name__ == "__main__":
    inp_dim = 512
    num_classes = 810
    batch = 8

    key = jax.random.PRNGKey(0)
    kx, kw, kb = jax.random.split(key, 3)

    # Deterministic PyTorch-Linear-style init: U(-1/sqrt(in), 1/sqrt(in)).
    bound = 1.0 / (inp_dim ** 0.5)
    weight = jax.random.uniform(kw, (num_classes, inp_dim),
                                minval=-bound, maxval=bound, dtype=jnp.float32)
    bias = jax.random.uniform(kb, (num_classes,),
                              minval=-bound, maxval=bound, dtype=jnp.float32)
    x = jax.random.normal(kx, (batch, inp_dim), dtype=jnp.float32)

    forward = make_my_linear(weight, bias)
    out = jax.block_until_ready(forward(x))

    # Correctness check against plain-JAX reference of the PyTorch forward.
    ref = x @ weight.T + bias
    assert out.shape == (batch, num_classes)
    assert jnp.allclose(out, ref, atol=1e-4, rtol=1e-4)

    print("KERNEL_OK")
</pallas_src>

<mosaic_0001>
module attributes {stable_mosaic.version = 11 : i64} {
  func.func @_linear_kernel(%arg0: memref<8x512xf32, #tpu.memory_space<vmem>>, %arg1: memref<512x896xf32, #tpu.memory_space<vmem>>, %arg2: memref<1x896xf32, #tpu.memory_space<vmem>>, %arg3: memref<8x896xf32, #tpu.memory_space<vmem>>) attributes {dimension_semantics = [], scalar_prefetch = 0 : i64, scratch_operands = 0 : i64, tpu.core_type = #tpu.core_type<tc>} {
    %c0 = arith.constant 0 : index
    %c0_0 = arith.constant 0 : index
    %0 = vector.load %arg0[%c0, %c0_0] : memref<8x512xf32, #tpu.memory_space<vmem>>, vector<8x512xf32>
    %c0_1 = arith.constant 0 : index
    %c0_2 = arith.constant 0 : index
    %1 = vector.load %arg1[%c0_1, %c0_2] : memref<512x896xf32, #tpu.memory_space<vmem>>, vector<512x896xf32>
    %cst = arith.constant dense<0.000000e+00> : vector<8x896xf32>
    %2 = tpu.matmul %0, %1, %cst {dimension_numbers = #tpu.dot_dimension_numbers<[1], [0], [0], [1], [0, 0, 1, 1], [], []>} : vector<8x512xf32>, vector<512x896xf32>, vector<8x896xf32> -> vector<8x896xf32>
    %c0_3 = arith.constant 0 : index
    %c0_4 = arith.constant 0 : index
    %3 = vector.load %arg2[%c0_3, %c0_4] : memref<1x896xf32, #tpu.memory_space<vmem>>, vector<1x896xf32>
    %4 = vector.broadcast %3 : vector<1x896xf32> to vector<8x896xf32>
    %5 = arith.addf %2, %4 : vector<8x896xf32>
    %c0_5 = arith.constant 0 : index
    %c0_6 = arith.constant 0 : index
    %6 = vector.load %arg3[%c0_5, %c0_6] : memref<8x896xf32, #tpu.memory_space<vmem>>, vector<8x896xf32>
    tpu.vector_store %arg3[%c0_5, %c0_6], %5 {strides = array<i32>} : memref<8x896xf32, #tpu.memory_space<vmem>>, vector<8x896xf32>,
    return
  }
}

</mosaic_0001>

<llo_original>
// kernel: forward.1
$region0: #{forward.1}
  #allocation0 [shape = 'u32[]', space=smem, size = 0x4, offset = 0x4, fixed_abs, tag = 'smem constant byte address 0x4 - core index']
  #allocation1 [shape = 'u32[144,128]{1,0:T(1,128)}', space=vmem, size = 0x12000, scoped, tag = 'internal scratch']
  %s0 = inlined_call_operand.hbm [shape: f32[8,512], index: 0, kind: input, shape index: {}]
  %s1 = inlined_call_operand.hbm [shape: f32[512,896], index: 1, kind: input, shape index: {}]
  %s2 = inlined_call_operand.hbm [shape: f32[1,896], index: 2, kind: input, shape index: {}]
  %s3 = inlined_call_operand.hbm [shape: f32[8,896], index: 3, kind: output, shape index: {}]
  %s4 = sld [smem:[#allocation0]]
  $region34: #{forward.1} parent=0
    _
  %s6 = ssub.s32 1, %s4
  %s7 = scalar_select 0, %s6, %s4
  $region1: #{forward.1} parent=0
    #allocation2 [shape = 'u8[16384]{0}', space=vmem, size = 0x4000, scoped, tag = 'input window, operand 0, single buffered']
    #allocation3 [shape = 's32[1]{0}', space=sflag, size = 0x4, scoped, tag = 'scoped memory for forward.1']
    #allocation4 [shape = 's32[1]{0}', space=sflag, size = 0x4, scoped, tag = 'scoped memory for forward.1']
    #allocation5 [shape = 'u8[1835008]{0}', space=vmem, size = 0x1c0000, scoped, tag = 'input window, operand 1, single buffered']
    #allocation6 [shape = 's32[1]{0}', space=sflag, size = 0x4, scoped, tag = 'scoped memory for forward.1']
    #allocation7 [shape = 'u8[3584]{0}', space=vmem, size = 0x1000, scoped, tag = 'input window, operand 2, single buffered']
    #allocation8 [shape = 'u8[28672]{0}', space=vmem, size = 0x7000, scoped, tag = 'output window, operand 0, single buffered']
    %8 = vsyncpa [#allocation3], 0
    %9 = vsyncpa [#allocation6], 0
    %10 = vsyncpa [#allocation4], 0
    // Predicated region
    $region2: #{forward.1} parent=1 // pred_check
      _
    $region3: #{forward.1} parent=1 // pred_check_branch
      %12 = sbr.rel (0) target = $region5
    $region4: #{forward.1} parent=1 // pred_region
      %s14 = ssub.s32 512, 512
      %15 = vsyncadd [#allocation3], %s14
      %s17 = sshll.u32 [#allocation2], 4
      %s18 = int_to_ptr.vmem [resolvable:$true] %s17
      %20 = dma.hbm_to_vmem [thread:$0]  %s0, 512, %s18, [#allocation3]
    $region5: #{forward.1} parent=1 // pred_fallthru
      _
    // Predicated region
    $region6: #{forward.1} parent=1 // pred_check
      _
    $region7: #{forward.1} parent=1 // pred_check_branch
      %22 = sbr.rel (0) target = $region9
    $region8: #{forward.1} parent=1 // pred_region
      %s24 = ssub.s32 57344, 57344
      %25 = vsyncadd [#allocation6], %s24
      %s26 = sshll.u32 [#allocation5], 4
      %s27 = int_to_ptr.vmem [resolvable:$true] %s26
      %32 = dma.hbm_to_vmem [thread:$0]  %s1, 57344, %s27, [#allocation6], 896, 896, 56
    $region9: #{forward.1} parent=1 // pred_fallthru
      _
    // Predicated region
    $region10: #{forward.1} parent=1 // pred_check
      _
    $region11: #{forward.1} parent=1 // pred_check_branch
      %34 = sbr.rel (0) target = $region13
    $region12: #{forward.1} parent=1 // pred_region
      %s36 = ssub.s32 112, 112
      %37 = vsyncadd [#allocation6], %s36
      %s39 = sshll.u32 [#allocation7], 4
      %s40 = int_to_ptr.vmem [resolvable:$true] %s39
      %42 = dma.hbm_to_vmem [thread:$0]  %s2, 112, %s40, [#allocation6]
    $region13: #{forward.1} parent=1 // pred_fallthru
      _
    // Predicated region
    $region14: #{forward.1} parent=1 // pred_check
      _
    $region15: #{forward.1} parent=1 // pred_check_branch
      %44 = sbr.rel (0) target = $region17
    $region16: #{forward.1} parent=1 // pred_region
      %45 = dma.done [#allocation3], 512
    $region17: #{forward.1} parent=1 // pred_fallthru
      _
    // Predicated region
    $region18: #{forward.1} parent=1 // pred_check
      _
    $region19: #{forward.1} parent=1 // pred_check_branch
      %47 = sbr.rel (0) target = $region21
    $region20: #{forward.1} parent=1 // pred_region
      %48 = dma.done [#allocation6], 57344
    $region21: #{forward.1} parent=1 // pred_fallthru
      _
    // Predicated region
    $region22: #{forward.1} parent=1 // pred_check
      _
    $region23: #{forward.1} parent=1 // pred_check_branch
      %50 = sbr.rel (0) target = $region25
    $region24: #{forward.1} parent=1 // pred_region
      %51 = dma.done [#allocation6], 112
    $region25: #{forward.1} parent=1 // pred_fallthru
      _
    %v52 = vld [vmem:[#allocation2] sm:$0xff]
    %v53 = vld [vmem:[#allocation2 + $0x8] sm:$0xff]
    %v54 = vld [vmem:[#allocation2 + $0x10] sm:$0xff]
    %v55 = vld [vmem:[#allocation2 + $0x18] sm:$0xff]
    %v56 = vld [vmem:[#allocation5] sm:$0xff]
    %v57 = vld [vmem:[#allocation5 + $0x8] sm:$0xff]
    %v58 = vld [vmem:[#allocation5 + $0x10] sm:$0xff]
    %v59 = vld [vmem:[#allocation5 + $0x18] sm:$0xff]
    %v60 = vld [vmem:[#allocation5 + $0x20] sm:$0xff]
    %v61 = vld [vmem:[#allocation5 + $0x28] sm:$0xff]
    %v62 = vld [vmem:[#allocation5 + $0x30] sm:$0xff]
    %v63 = vld [vmem:[#allocation5 + $0x38] sm:$0xff]
    %v64 = vld [vmem:[#allocation5 + $0x40] sm:$0xff]
    %v65 = vld [vmem:[#allocation5 + $0x48] sm:$0xff]
    %v66 = vld [vmem:[#allocation5 + $0x50] sm:$0xff]
    %v67 = vld [vmem:[#allocation5 + $0x58] sm:$0xff]
    %v68 = vld [vmem:[#allocation5 + $0x60] sm:$0xff]
    %v69 = vld [vmem:[#allocation5 + $0x68] sm:$0xff]
    %v70 = vld [vmem:[#allocation5 + $0x70] sm:$0xff]
    %v71 = vld [vmem:[#allocation5 + $0x78] sm:$0xff]
    %v72 = vld [vmem:[#allocation5 + $0x80] sm:$0xff]
    %v73 = vld [vmem:[#allocation5 + $0x88] sm:$0xff]
    %v74 = vld [vmem:[#allocation5 + $0x90] sm:$0xff]
    %v75 = vld [vmem:[#allocation5 + $0x98] sm:$0xff]
    %v76 = vld [vmem:[#allocation5 + $0xa0] sm:$0xff]
    %v77 = vld [vmem:[#allocation5 + $0xa8] sm:$0xff]
    %v78 = vld [vmem:[#allocation5 + $0xb0] sm:$0xff]
    %v79 = vld [vmem:[#allocation5 + $0xb8] sm:$0xff]
    %v80 = vld [vmem:[#allocation5 + $0xc0] sm:$0xff]
    %v81 = vld [vmem:[#allocation5 + $0xc8] sm:$0xff]
    %v82 = vld [vmem:[#allocation5 + $0xd0] sm:$0xff]
    %v83 = vld [vmem:[#allocation5 + $0xd8] sm:$0xff]
    %v84 = vld [vmem:[#allocation5 + $0xe0] sm:$0xff]
    %v85 = vld [vmem:[#allocation5 + $0xe8] sm:$0xff]
    %v86 = vld [vmem:[#allocation5 + $0xf0] sm:$0xff]
    %v87 = vld [vmem:[#allocation5 + $0xf8] sm:$0xff]
    %v88 = vld [vmem:[#allocation5 + $0x100] sm:$0xff]
    %v89 = vld [vmem:[#allocation5 + $0x108] sm:$0xff]
    %v90 = vld [vmem:[#allocation5 + $0x110] sm:$0xff]
    %v91 = vld [vmem:[#allocation5 + $0x118] sm:$0xff]
    %v92 = vld [vmem:[#allocation5 + $0x120] sm:$0xff]
    %v93 = vld [vmem:[#allocation5 + $0x128] sm:$0xff]
    %v94 = vld [vmem:[#allocation5 + $0x130] sm:$0xff]
    %v95 = vld [vmem:[#allocation5 + $0x138] sm:$0xff]
    %v96 = vld [vmem:[#allocation5 + $0x140] sm:$0xff]
    %v97 = vld [vmem:[#allocation5 + $0x148] sm:$0xff]
    %v98 = vld [vmem:[#allocation5 + $0x150] sm:$0xff]
    %v99 = vld [vmem:[#allocation5 + $0x158] sm:$0xff]
    %v100 = vld [vmem:[#allocation5 + $0x160] sm:$0xff]
    %v101 = vld [vmem:[#allocation5 + $0x168] sm:$0xff]
    %v102 = vld [vmem:[#allocation5 + $0x170] sm:$0xff]
    %v103 = vld [vmem:[#allocation5 + $0x178] sm:$0xff]
    %v104 = vld [vmem:[#allocation5 + $0x180] sm:$0xff]
    %v105 = vld [vmem:[#allocation5 + $0x188] sm:$0xff]
    %v106 = vld [vmem:[#allocation5 + $0x190] sm:$0xff]
    %v107 = vld [vmem:[#allocation5 + $0x198] sm:$0xff]
    %v108 = vld [vmem:[#allocation5 + $0x1a0] sm:$0xff]
    %v109 = vld [vmem:[#allocation5 + $0x1a8] sm:$0xff]
    %v110 = vld [vmem:[#allocation5 + $0x1b0] sm:$0xff]
    %v111 = vld [vmem:[#allocation5 + $0x1b8] sm:$0xff]
    %v112 = vld [vmem:[#allocation5 + $0x1c0] sm:$0xff]
    %v113 = vld [vmem:[#allocation5 + $0x1c8] sm:$0xff]
    %v114 = vld [vmem:[#allocation5 + $0x1d0] sm:$0xff]
    %v115 = vld [vmem:[#allocation5 + $0x1d8] sm:$0xff]
    %v116 = vld [vmem:[#allocation5 + $0x1e0] sm:$0xff]
    %v117 = vld [vmem:[#allocation5 + $0x1e8] sm:$0xff]
    %v118 = vld [vmem:[#allocation5 + $0x1f0] sm:$0xff]
    %v119 = vld [vmem:[#allocation5 + $0x1f8] sm:$0xff]
    %v120 = vld [vmem:[#allocation5 + $0x200] sm:$0xff]
    %v121 = vld [vmem:[#allocation5 + $0x208] sm:$0xff]
    %v122 = vld [vmem:[#allocation5 + $0x210] sm:$0xff]
    %v123 = vld [vmem:[#allocation5 + $0x218] sm:$0xff]
    %v124 = vld [vmem:[#allocation5 + $0x220] sm:$0xff]
    %v125 = vld [vmem:[#allocation5 + $0x228] sm:$0xff]
    %v126 = vld [vmem:[#allocation5 + $0x230] sm:$0xff]
    %v127 = vld [vmem:[#allocation5 + $0x238] sm:$0xff]
    %v128 = vld [vmem:[#allocation5 + $0x240] sm:$0xff]
    %v129 = vld [vmem:[#allocation5 + $0x248] sm:$0xff]
    %v130 = vld [vmem:[#allocation5 + $0x250] sm:$0xff]
    %v131 = vld [vmem:[#allocation5 + $0x258] sm:$0xff]
    %v132 = vld [vmem:[#allocation5 + $0x260] sm:$0xff]
    %v133 = vld [vmem:[#allocation5 + $0x268] sm:$0xff]
    %v134 = vld [vmem:[#allocation5 + $0x270] sm:$0xff]
    %v135 = vld [vmem:[#allocation5 + $0x278] sm:$0xff]
    %v136 = vld [vmem:[#allocation5 + $0x280] sm:$0xff]
    %v137 = vld [vmem:[#allocation5 + $0x288] sm:$0xff]
    %v138 = vld [vmem:[#allocation5 + $0x290] sm:$0xff]
    %v139 = vld [vmem:[#allocation5 + $0x298] sm:$0xff]
    %v140 = vld [vmem:[#allocation5 + $0x2a0] sm:$0xff]
    %v141 = vld [vmem:[#allocation5 + $0x2a8] sm:$0xff]
    %v142 = vld [vmem:[#allocation5 + $0x2b0] sm:$0xff]
    %v143 = vld [vmem:[#allocation5 + $0x2b8] sm:$0xff]
    %v144 = vld [vmem:[#allocation5 + $0x2c0] sm:$0xff]
    %v145 = vld [vmem:[#allocation5 + $0x2c8] sm:$0xff]
    %v146 = vld [vmem:[#allocation5 + $0x2d0] sm:$0xff]
    %v147 = vld [vmem:[#allocation5 + $0x2d8] sm:$0xff]
    %v148 = vld [vmem:[#allocation5 + $0x2e0] sm:$0xff]
    %v149 = vld [vmem:[#allocation5 + $0x2e8] sm:$0xff]
    %v150 = vld [vmem:[#allocation5 + $0x2f0] sm:$0xff]
    %v151 = vld [vmem:[#allocation5 + $0x2f8] sm:$0xff]
    %v152 = vld [vmem:[#allocation5 + $0x300] sm:$0xff]
    %v153 = vld [vmem:[#allocation5 + $0x308] sm:$0xff]
    %v154 = vld [vmem:[#allocation5 + $0x310] sm:$0xff]
    %v155 = vld [vmem:[#allocation5 + $0x318] sm:$0xff]
    %v156 = vld [vmem:[#allocation5 + $0x320] sm:$0xff]
    %v157 = vld [vmem:[#allocation5 + $0x328] sm:$0xff]
    %v158 = vld [vmem:[#allocation5 + $0x330] sm:$0xff]
    %v159 = vld [vmem:[#allocation5 + $0x338] sm:$0xff]
    %v160 = vld [vmem:[#allocation5 + $0x340] sm:$0xff]
    %v161 = vld [vmem:[#allocation5 + $0x348] sm:$0xff]
    %v162 = vld [vmem:[#allocation5 + $0x350] sm:$0xff]
    %v163 = vld [vmem:[#allocation5 + $0x358] sm:$0xff]
    %v164 = vld [vmem:[#allocation5 + $0x360] sm:$0xff]
    %v165 = vld [vmem:[#allocation5 + $0x368] sm:$0xff]
    %v166 = vld [vmem:[#allocation5 + $0x370] sm:$0xff]
    %v167 = vld [vmem:[#allocation5 + $0x378] sm:$0xff]
    %v168 = vld [vmem:[#allocation5 + $0x380] sm:$0xff]
    %v169 = vld [vmem:[#allocation5 + $0x388] sm:$0xff]
    %v170 = vld [vmem:[#allocation5 + $0x390] sm:$0xff]
    %v171 = vld [vmem:[#allocation5 + $0x398] sm:$0xff]
    %v172 = vld [vmem:[#allocation5 + $0x3a0] sm:$0xff]
    %v173 = vld [vmem:[#allocation5 + $0x3a8] sm:$0xff]
    %v174 = vld [vmem:[#allocation5 + $0x3b0] sm:$0xff]
    %v175 = vld [vmem:[#allocation5 + $0x3b8] sm:$0xff]
    %v176 = vld [vmem:[#allocation5 + $0x3c0] sm:$0xff]
    %v177 = vld [vmem:[#allocation5 + $0x3c8] sm:$0xff]
    %v178 = vld [vmem:[#allocation5 + $0x3d0] sm:$0xff]
    %v179 = vld [vmem:[#allocation5 + $0x3d8] sm:$0xff]
    %v180 = vld [vmem:[#allocation5 + $0x3e0] sm:$0xff]
    %v181 = vld [vmem:[#allocation5 + $0x3e8] sm:$0xff]
    %v182 = vld [vmem:[#allocation5 + $0x3f0] sm:$0xff]
    %v183 = vld [vmem:[#allocation5 + $0x3f8] sm:$0xff]
    %v184 = vld [vmem:[#allocation5 + $0x400] sm:$0xff]
    %v185 = vld [vmem:[#allocation5 + $0x408] sm:$0xff]
    %v186 = vld [vmem:[#allocation5 + $0x410] sm:$0xff]
    %v187 = vld [vmem:[#allocation5 + $0x418] sm:$0xff]
    %v188 = vld [vmem:[#allocation5 + $0x420] sm:$0xff]
    %v189 = vld [vmem:[#allocation5 + $0x428] sm:$0xff]
    %v190 = vld [vmem:[#allocation5 + $0x430] sm:$0xff]
    %v191 = vld [vmem:[#allocation5 + $0x438] sm:$0xff]
    %v192 = vld [vmem:[#allocation5 + $0x440] sm:$0xff]
    %v193 = vld [vmem:[#allocation5 + $0x448] sm:$0xff]
    %v194 = vld [vmem:[#allocation5 + $0x450] sm:$0xff]
    %v195 = vld [vmem:[#allocation5 + $0x458] sm:$0xff]
    %v196 = vld [vmem:[#allocation5 + $0x460] sm:$0xff]
    %v197 = vld [vmem:[#allocation5 + $0x468] sm:$0xff]
    %v198 = vld [vmem:[#allocation5 + $0x470] sm:$0xff]
    %v199 = vld [vmem:[#allocation5 + $0x478] sm:$0xff]
    %v200 = vld [vmem:[#allocation5 + $0x480] sm:$0xff]
    %v201 = vld [vmem:[#allocation5 + $0x488] sm:$0xff]
    %v202 = vld [vmem:[#allocation5 + $0x490] sm:$0xff]
    %v203 = vld [vmem:[#allocation5 + $0x498] sm:$0xff]
    %v204 = vld [vmem:[#allocation5 + $0x4a0] sm:$0xff]
    %v205 = vld [vmem:[#allocation5 + $0x4a8] sm:$0xff]
    %v206 = vld [vmem:[#allocation5 + $0x4b0] sm:$0xff]
    %v207 = vld [vmem:[#allocation5 + $0x4b8] sm:$0xff]
    %v208 = vld [vmem:[#allocation5 + $0x4c0] sm:$0xff]
    %v209 = vld [vmem:[#allocation5 + $0x4c8] sm:$0xff]
    %v210 = vld [vmem:[#allocation5 + $0x4d0] sm:$0xff]
    %v211 = vld [vmem:[#allocation5 + $0x4d8] sm:$0xff]
    %v212 = vld [vmem:[#allocation5 + $0x4e0] sm:$0xff]
    %v213 = vld [vmem:[#allocation5 + $0x4e8] sm:$0xff]
    %v214 = vld [vmem:[#allocation5 + $0x4f0] sm:$0xff]
    %v215 = vld [vmem:[#allocation5 + $0x4f8] sm:$0xff]
    %v216 = vld [vmem:[#allocation5 + $0x500] sm:$0xff]
    %v217 = vld [vmem:[#allocation5 + $0x508] sm:$0xff]
    %v218 = vld [vmem:[#allocation5 + $0x510] sm:$0xff]
    %v219 = vld [vmem:[#allocation5 + $0x518] sm:$0xff]
    %v220 = vld [vmem:[#allocation5 + $0x520] sm:$0xff]
    %v221 = vld [vmem:[#allocation5 + $0x528] sm:$0xff]
    %v222 = vld [vmem:[#allocation5 + $0x530] sm:$0xff]
    %v223 = vld [vmem:[#allocation5 + $0x538] sm:$0xff]
    %v224 = vld [vmem:[#allocation5 + $0x540] sm:$0xff]
    %v225 = vld [vmem:[#allocation5 + $0x548] sm:$0xff]
    %v226 = vld [vmem:[#allocation5 + $0x550] sm:$0xff]
    %v227 = vld [vmem:[#allocation5 + $0x558] sm:$0xff]
    %v228 = vld [vmem:[#allocation5 + $0x560] sm:$0xff]
    %v229 = vld [vmem:[#allocation5 + $0x568] sm:$0xff]
    %v230 = vld [vmem:[#allocation5 + $0x570] sm:$0xff]
    %v231 = vld [vmem:[#allocation5 + $0x578] sm:$0xff]
    %v232 = vld [vmem:[#allocation5 + $0x580] sm:$0xff]
    %v233 = vld [vmem:[#allocation5 + $0x588] sm:$0xff]
    %v234 = vld [vmem:[#allocation5 + $0x590] sm:$0xff]
    %v235 = vld [vmem:[#allocation5 + $0x598] sm:$0xff]
    %v236 = vld [vmem:[#allocation5 + $0x5a0] sm:$0xff]
    %v237 = vld [vmem:[#allocation5 + $0x5a8] sm:$0xff]
    %v238 = vld [vmem:[#allocation5 + $0x5b0] sm:$0xff]
    %v239 = vld [vmem:[#allocation5 + $0x5b8] sm:$0xff]
    %v240 = vld [vmem:[#allocation5 + $0x5c0] sm:$0xff]
    %v241 = vld [vmem:[#allocation5 + $0x5c8] sm:$0xff]
    %v242 = vld [vmem:[#allocation5 + $0x5d0] sm:$0xff]
    %v243 = vld [vmem:[#allocation5 + $0x5d8] sm:$0xff]
    %v244 = vld [vmem:[#allocation5 + $0x5e0] sm:$0xff]
    %v245 = vld [vmem:[#allocation5 + $0x5e8] sm:$0xff]
    %v246 = vld [vmem:[#allocation5 + $0x5f0] sm:$0xff]
    %v247 = vld [vmem:[#allocation5 + $0x5f8] sm:$0xff]
    %v248 = vld [vmem:[#allocation5 + $0x600] sm:$0xff]
    %v249 = vld [vmem:[#allocation5 + $0x608] sm:$0xff]
    %v250 = vld [vmem:[#allocation5 + $0x610] sm:$0xff]
    %v251 = vld [vmem:[#allocation5 + $0x618] sm:$0xff]
    %v252 = vld [vmem:[#allocation5 + $0x620] sm:$0xff]
    %v253 = vld [vmem:[#allocation5 + $0x628] sm:$0xff]
    %v254 = vld [vmem:[#allocation5 + $0x630] sm:$0xff]
    %v255 = vld [vmem:[#allocation5 + $0x638] sm:$0xff]
    %v256 = vld [vmem:[#allocation5 + $0x640] sm:$0xff]
    %v257 = vld [vmem:[#allocation5 + $0x648] sm:$0xff]
    %v258 = vld [vmem:[#allocation5 + $0x650] sm:$0xff]
    %v259 = vld [vmem:[#allocation5 + $0x658] sm:$0xff]
    %v260 = vld [vmem:[#allocation5 + $0x660] sm:$0xff]
    %v261 = vld [vmem:[#allocation5 + $0x668] sm:$0xff]
    %v262 = vld [vmem:[#allocation5 + $0x670] sm:$0xff]
    %v263 = vld [vmem:[#allocation5 + $0x678] sm:$0xff]
    %v264 = vld [vmem:[#allocation5 + $0x680] sm:$0xff]
    %v265 = vld [vmem:[#allocation5 + $0x688] sm:$0xff]
    %v266 = vld [vmem:[#allocation5 + $0x690] sm:$0xff]
    %v267 = vld [vmem:[#allocation5 + $0x698] sm:$0xff]
    %v268 = vld [vmem:[#allocation5 + $0x6a0] sm:$0xff]
    %v269 = vld [vmem:[#allocation5 + $0x6a8] sm:$0xff]
    %v270 = vld [vmem:[#allocation5 + $0x6b0] sm:$0xff]
    %v271 = vld [vmem:[#allocation5 + $0x6b8] sm:$0xff]
    %v272 = vld [vmem:[#allocation5 + $0x6c0] sm:$0xff]
    %v273 = vld [vmem:[#allocation5 + $0x6c8] sm:$0xff]
    %v274 = vld [vmem:[#allocation5 + $0x6d0] sm:$0xff]
    %v275 = vld [vmem:[#allocation5 + $0x6d8] sm:$0xff]
    %v276 = vld [vmem:[#allocation5 + $0x6e0] sm:$0xff]
    %v277 = vld [vmem:[#allocation5 + $0x6e8] sm:$0xff]
    %v278 = vld [vmem:[#allocation5 + $0x6f0] sm:$0xff]
    %v279 = vld [vmem:[#allocation5 + $0x6f8] sm:$0xff]
    %v280 = vld [vmem:[#allocation5 + $0x700] sm:$0xff]
    %v281 = vld [vmem:[#allocation5 + $0x708] sm:$0xff]
    %v282 = vld [vmem:[#allocation5 + $0x710] sm:$0xff]
    %v283 = vld [vmem:[#allocation5 + $0x718] sm:$0xff]
    %v284 = vld [vmem:[#allocation5 + $0x720] sm:$0xff]
    %v285 = vld [vmem:[#allocation5 + $0x728] sm:$0xff]
    %v286 = vld [vmem:[#allocation5 + $0x730] sm:$0xff]
    %v287 = vld [vmem:[#allocation5 + $0x738] sm:$0xff]
    %v288 = vld [vmem:[#allocation5 + $0x740] sm:$0xff]
    %v289 = vld [vmem:[#allocation5 + $0x748] sm:$0xff]
    %v290 = vld [vmem:[#allocation5 + $0x750] sm:$0xff]
    %v291 = vld [vmem:[#allocation5 + $0x758] sm:$0xff]
    %v292 = vld [vmem:[#allocation5 + $0x760] sm:$0xff]
    %v293 = vld [vmem:[#allocation5 + $0x768] sm:$0xff]
    %v294 = vld [vmem:[#allocation5 + $0x770] sm:$0xff]
    %v295 = vld [vmem:[#allocation5 + $0x778] sm:$0xff]
    %v296 = vld [vmem:[#allocation5 + $0x780] sm:$0xff]
    %v297 = vld [vmem:[#allocation5 + $0x788] sm:$0xff]
    %v298 = vld [vmem:[#allocation5 + $0x790] sm:$0xff]
    %v299 = vld [vmem:[#allocation5 + $0x798] sm:$0xff]
    %v300 = vld [vmem:[#allocation5 + $0x7a0] sm:$0xff]
    %v301 = vld [vmem:[#allocation5 + $0x7a8] sm:$0xff]
    %v302 = vld [vmem:[#allocation5 + $0x7b0] sm:$0xff]
    %v303 = vld [vmem:[#allocation5 + $0x7b8] sm:$0xff]
    %v304 = vld [vmem:[#allocation5 + $0x7c0] sm:$0xff]
    %v305 = vld [vmem:[#allocation5 + $0x7c8] sm:$0xff]
    %v306 = vld [vmem:[#allocation5 + $0x7d0] sm:$0xff]
    %v307 = vld [vmem:[#allocation5 + $0x7d8] sm:$0xff]
    %v308 = vld [vmem:[#allocation5 + $0x7e0] sm:$0xff]
    %v309 = vld [vmem:[#allocation5 + $0x7e8] sm:$0xff]
    %v310 = vld [vmem:[#allocation5 + $0x7f0] sm:$0xff]
    %v311 = vld [vmem:[#allocation5 + $0x7f8] sm:$0xff]
    %v312 = vld [vmem:[#allocation5 + $0x800] sm:$0xff]
    %v313 = vld [vmem:[#allocation5 + $0x808] sm:$0xff]
    %v314 = vld [vmem:[#allocation5 + $0x810] sm:$0xff]
    %v315 = vld [vmem:[#allocation5 + $0x818] sm:$0xff]
    %v316 = vld [vmem:[#allocation5 + $0x820] sm:$0xff]
    %v317 = vld [vmem:[#allocation5 + $0x828] sm:$0xff]
    %v318 = vld [vmem:[#allocation5 + $0x830] sm:$0xff]
    %v319 = vld [vmem:[#allocation5 + $0x838] sm:$0xff]
    %v320 = vld [vmem:[#allocation5 + $0x840] sm:$0xff]
    %v321 = vld [vmem:[#allocation5 + $0x848] sm:$0xff]
    %v322 = vld [vmem:[#allocation5 + $0x850] sm:$0xff]
    %v323 = vld [vmem:[#allocation5 + $0x858] sm:$0xff]
    %v324 = vld [vmem:[#allocation5 + $0x860] sm:$0xff]
    %v325 = vld [vmem:[#allocation5 + $0x868] sm:$0xff]
    %v326 = vld [vmem:[#allocation5 + $0x870] sm:$0xff]
    %v327 = vld [vmem:[#allocation5 + $0x878] sm:$0xff]
    %v328 = vld [vmem:[#allocation5 + $0x880] sm:$0xff]
    %v329 = vld [vmem:[#allocation5 + $0x888] sm:$0xff]
    %v330 = vld [vmem:[#allocation5 + $0x890] sm:$0xff]
    %v331 = vld [vmem:[#allocation5 + $0x898] sm:$0xff]
    %v332 = vld [vmem:[#allocation5 + $0x8a0] sm:$0xff]
    %v333 = vld [vmem:[#allocation5 + $0x8a8] sm:$0xff]
    %v334 = vld [vmem:[#allocation5 + $0x8b0] sm:$0xff]
    %v335 = vld [vmem:[#allocation5 + $0x8b8] sm:$0xff]
    %v336 = vld [vmem:[#allocation5 + $0x8c0] sm:$0xff]
    %v337 = vld [vmem:[#allocation5 + $0x8c8] sm:$0xff]
    %v338 = vld [vmem:[#allocation5 + $0x8d0] sm:$0xff]
    %v339 = vld [vmem:[#allocation5 + $0x8d8] sm:$0xff]
    %v340 = vld [vmem:[#allocation5 + $0x8e0] sm:$0xff]
    %v341 = vld [vmem:[#allocation5 + $0x8e8] sm:$0xff]
    %v342 = vld [vmem:[#allocation5 + $0x8f0] sm:$0xff]
    %v343 = vld [vmem:[#allocation5 + $0x8f8] sm:$0xff]
    %v344 = vld [vmem:[#allocation5 + $0x900] sm:$0xff]
    %v345 = vld [vmem:[#allocation5 + $0x908] sm:$0xff]
    %v346 = vld [vmem:[#allocation5 + $0x910] sm:$0xff]
    %v347 = vld [vmem:[#allocation5 + $0x918] sm:$0xff]
    %v348 = vld [vmem:[#allocation5 + $0x920] sm:$0xff]
    %v349 = vld [vmem:[#allocation5 + $0x928] sm:$0xff]
    %v350 = vld [vmem:[#allocation5 + $0x930] sm:$0xff]
    %v351 = vld [vmem:[#allocation5 + $0x938] sm:$0xff]
    %v352 = vld [vmem:[#allocation5 + $0x940] sm:$0xff]
    %v353 = vld [vmem:[#allocation5 + $0x948] sm:$0xff]
    %v354 = vld [vmem:[#allocation5 + $0x950] sm:$0xff]
    %v355 = vld [vmem:[#allocation5 + $0x958] sm:$0xff]
    %v356 = vld [vmem:[#allocation5 + $0x960] sm:$0xff]
    %v357 = vld [vmem:[#allocation5 + $0x968] sm:$0xff]
    %v358 = vld [vmem:[#allocation5 + $0x970] sm:$0xff]
    %v359 = vld [vmem:[#allocation5 + $0x978] sm:$0xff]
    %v360 = vld [vmem:[#allocation5 + $0x980] sm:$0xff]
    %v361 = vld [vmem:[#allocation5 + $0x988] sm:$0xff]
    %v362 = vld [vmem:[#allocation5 + $0x990] sm:$0xff]
    %v363 = vld [vmem:[#allocation5 + $0x998] sm:$0xff]
    %v364 = vld [vmem:[#allocation5 + $0x9a0] sm:$0xff]
    %v365 = vld [vmem:[#allocation5 + $0x9a8] sm:$0xff]
    %v366 = vld [vmem:[#allocation5 + $0x9b0] sm:$0xff]
    %v367 = vld [vmem:[#allocation5 + $0x9b8] sm:$0xff]
    %v368 = vld [vmem:[#allocation5 + $0x9c0] sm:$0xff]
    %v369 = vld [vmem:[#allocation5 + $0x9c8] sm:$0xff]
    %v370 = vld [vmem:[#allocation5 + $0x9d0] sm:$0xff]
    %v371 = vld [vmem:[#allocation5 + $0x9d8] sm:$0xff]
    %v372 = vld [vmem:[#allocation5 + $0x9e0] sm:$0xff]
    %v373 = vld [vmem:[#allocation5 + $0x9e8] sm:$0xff]
    %v374 = vld [vmem:[#allocation5 + $0x9f0] sm:$0xff]
    %v375 = vld [vmem:[#allocation5 + $0x9f8] sm:$0xff]
    %v376 = vld [vmem:[#allocation5 + $0xa00] sm:$0xff]
    %v377 = vld [vmem:[#allocation5 + $0xa08] sm:$0xff]
    %v378 = vld [vmem:[#allocation5 + $0xa10] sm:$0xff]
    %v379 = vld [vmem:[#allocation5 + $0xa18] sm:$0xff]
    %v380 = vld [vmem:[#allocation5 + $0xa20] sm:$0xff]
    %v381 = vld [vmem:[#allocation5 + $0xa28] sm:$0xff]
    %v382 = vld [vmem:[#allocation5 + $0xa30] sm:$0xff]
    %v383 = vld [vmem:[#allocation5 + $0xa38] sm:$0xff]
    %v384 = vld [vmem:[#allocation5 + $0xa40] sm:$0xff]
    %v385 = vld [vmem:[#allocation5 + $0xa48] sm:$0xff]
    %v386 = vld [vmem:[#allocation5 + $0xa50] sm:$0xff]
    %v387 = vld [vmem:[#allocation5 + $0xa58] sm:$0xff]
    %v388 = vld [vmem:[#allocation5 + $0xa60] sm:$0xff]
    %v389 = vld [vmem:[#allocation5 + $0xa68] sm:$0xff]
    %v390 = vld [vmem:[#allocation5 + $0xa70] sm:$0xff]
    %v391 = vld [vmem:[#allocation5 + $0xa78] sm:$0xff]
    %v392 = vld [vmem:[#allocation5 + $0xa80] sm:$0xff]
    %v393 = vld [vmem:[#allocation5 + $0xa88] sm:$0xff]
    %v394 = vld [vmem:[#allocation5 + $0xa90] sm:$0xff]
    %v395 = vld [vmem:[#allocation5 + $0xa98] sm:$0xff]
    %v396 = vld [vmem:[#allocation5 + $0xaa0] sm:$0xff]
    %v397 = vld [vmem:[#allocation5 + $0xaa8] sm:$0xff]
    %v398 = vld [vmem:[#allocation5 + $0xab0] sm:$0xff]
    %v399 = vld [vmem:[#allocation5 + $0xab8] sm:$0xff]
    %v400 = vld [vmem:[#allocation5 + $0xac0] sm:$0xff]
    %v401 = vld [vmem:[#allocation5 + $0xac8] sm:$0xff]
    %v402 = vld [vmem:[#allocation5 + $0xad0] sm:$0xff]
    %v403 = vld [vmem:[#allocation5 + $0xad8] sm:$0xff]
    %v404 = vld [vmem:[#allocation5 + $0xae0] sm:$0xff]
    %v405 = vld [vmem:[#allocation5 + $0xae8] sm:$0xff]
    %v406 = vld [vmem:[#allocation5 + $0xaf0] sm:$0xff]
    %v407 = vld [vmem:[#allocation5 + $0xaf8] sm:$0xff]
    %v408 = vld [vmem:[#allocation5 + $0xb00] sm:$0xff]
    %v409 = vld [vmem:[#allocation5 + $0xb08] sm:$0xff]
    %v410 = vld [vmem:[#allocation5 + $0xb10] sm:$0xff]
    %v411 = vld [vmem:[#allocation5 + $0xb18] sm:$0xff]
    %v412 = vld [vmem:[#allocation5 + $0xb20] sm:$0xff]
    %v413 = vld [vmem:[#allocation5 + $0xb28] sm:$0xff]
    %v414 = vld [vmem:[#allocation5 + $0xb30] sm:$0xff]
    %v415 = vld [vmem:[#allocation5 + $0xb38] sm:$0xff]
    %v416 = vld [vmem:[#allocation5 + $0xb40] sm:$0xff]
    %v417 = vld [vmem:[#allocation5 + $0xb48] sm:$0xff]
    %v418 = vld [vmem:[#allocation5 + $0xb50] sm:$0xff]
    %v419 = vld [vmem:[#allocation5 + $0xb58] sm:$0xff]
    %v420 = vld [vmem:[#allocation5 + $0xb60] sm:$0xff]
    %v421 = vld [vmem:[#allocation5 + $0xb68] sm:$0xff]
    %v422 = vld [vmem:[#allocation5 + $0xb70] sm:$0xff]
    %v423 = vld [vmem:[#allocation5 + $0xb78] sm:$0xff]
    %v424 = vld [vmem:[#allocation5 + $0xb80] sm:$0xff]
    %v425 = vld [vmem:[#allocation5 + $0xb88] sm:$0xff]
    %v426 = vld [vmem:[#allocation5 + $0xb90] sm:$0xff]
    %v427 = vld [vmem:[#allocation5 + $0xb98] sm:$0xff]
    %v428 = vld [vmem:[#allocation5 + $0xba0] sm:$0xff]
    %v429 = vld [vmem:[#allocation5 + $0xba8] sm:$0xff]
    %v430 = vld [vmem:[#allocation5 + $0xbb0] sm:$0xff]
    %v431 = vld [vmem:[#allocation5 + $0xbb8] sm:$0xff]
    %v432 = vld [vmem:[#allocation5 + $0xbc0] sm:$0xff]
    %v433 = vld [vmem:[#allocation5 + $0xbc8] sm:$0xff]
    %v434 = vld [vmem:[#allocation5 + $0xbd0] sm:$0xff]
    %v435 = vld [vmem:[#allocation5 + $0xbd8] sm:$0xff]
    %v436 = vld [vmem:[#allocation5 + $0xbe0] sm:$0xff]
    %v437 = vld [vmem:[#allocation5 + $0xbe8] sm:$0xff]
    %v438 = vld [vmem:[#allocation5 + $0xbf0] sm:$0xff]
    %v439 = vld [vmem:[#allocation5 + $0xbf8] sm:$0xff]
    %v440 = vld [vmem:[#allocation5 + $0xc00] sm:$0xff]
    %v441 = vld [vmem:[#allocation5 + $0xc08] sm:$0xff]
    %v442 = vld [vmem:[#allocation5 + $0xc10] sm:$0xff]
    %v443 = vld [vmem:[#allocation5 + $0xc18] sm:$0xff]
    %v444 = vld [vmem:[#allocation5 + $0xc20] sm:$0xff]
    %v445 = vld [vmem:[#allocation5 + $0xc28] sm:$0xff]
    %v446 = vld [vmem:[#allocation5 + $0xc30] sm:$0xff]
    %v447 = vld [vmem:[#allocation5 + $0xc38] sm:$0xff]
    %v448 = vld [vmem:[#allocation5 + $0xc40] sm:$0xff]
    %v449 = vld [vmem:[#allocation5 + $0xc48] sm:$0xff]
    %v450 = vld [vmem:[#allocation5 + $0xc50] sm:$0xff]
    %v451 = vld [vmem:[#allocation5 + $0xc58] sm:$0xff]
    %v452 = vld [vmem:[#allocation5 + $0xc60] sm:$0xff]
    %v453 = vld [vmem:[#allocation5 + $0xc68] sm:$0xff]
    %v454 = vld [vmem:[#allocation5 + $0xc70] sm:$0xff]
    %v455 = vld [vmem:[#allocation5 + $0xc78] sm:$0xff]
    %v456 = vld [vmem:[#allocation5 + $0xc80] sm:$0xff]
    %v457 = vld [vmem:[#allocation5 + $0xc88] sm:$0xff]
    %v458 = vld [vmem:[#allocation5 + $0xc90] sm:$0xff]
    %v459 = vld [vmem:[#allocation5 + $0xc98] sm:$0xff]
    %v460 = vld [vmem:[#allocation5 + $0xca0] sm:$0xff]
    %v461 = vld [vmem:[#allocation5 + $0xca8] sm:$0xff]
    %v462 = vld [vmem:[#allocation5 + $0xcb0] sm:$0xff]
    %v463 = vld [vmem:[#allocation5 + $0xcb8] sm:$0xff]
    %v464 = vld [vmem:[#allocation5 + $0xcc0] sm:$0xff]
    %v465 = vld [vmem:[#allocation5 + $0xcc8] sm:$0xff]
    %v466 = vld [vmem:[#allocation5 + $0xcd0] sm:$0xff]
    %v467 = vld [vmem:[#allocation5 + $0xcd8] sm:$0xff]
    %v468 = vld [vmem:[#allocation5 + $0xce0] sm:$0xff]
    %v469 = vld [vmem:[#allocation5 + $0xce8] sm:$0xff]
    %v470 = vld [vmem:[#allocation5 + $0xcf0] sm:$0xff]
    %v471 = vld [vmem:[#allocation5 + $0xcf8] sm:$0xff]
    %v472 = vld [vmem:[#allocation5 + $0xd00] sm:$0xff]
    %v473 = vld [vmem:[#allocation5 + $0xd08] sm:$0xff]
    %v474 = vld [vmem:[#allocation5 + $0xd10] sm:$0xff]
    %v475 = vld [vmem:[#allocation5 + $0xd18] sm:$0xff]
    %v476 = vld [vmem:[#allocation5 + $0xd20] sm:$0xff]
    %v477 = vld [vmem:[#allocation5 + $0xd28] sm:$0xff]
    %v478 = vld [vmem:[#allocation5 + $0xd30] sm:$0xff]
    %v479 = vld [vmem:[#allocation5 + $0xd38] sm:$0xff]
    %v480 = vld [vmem:[#allocation5 + $0xd40] sm:$0xff]
    %v481 = vld [vmem:[#allocation5 + $0xd48] sm:$0xff]
    %v482 = vld [vmem:[#allocation5 + $0xd50] sm:$0xff]
    %v483 = vld [vmem:[#allocation5 + $0xd58] sm:$0xff]
    %v484 = vld [vmem:[#allocation5 + $0xd60] sm:$0xff]
    %v485 = vld [vmem:[#allocation5 + $0xd68] sm:$0xff]
    %v486 = vld [vmem:[#allocation5 + $0xd70] sm:$0xff]
    %v487 = vld [vmem:[#allocation5 + $0xd78] sm:$0xff]
    %v488 = vld [vmem:[#allocation5 + $0xd80] sm:$0xff]
    %v489 = vld [vmem:[#allocation5 + $0xd88] sm:$0xff]
    %v490 = vld [vmem:[#allocation5 + $0xd90] sm:$0xff]
    %v491 = vld [vmem:[#allocation5 + $0xd98] sm:$0xff]
    %v492 = vld [vmem:[#allocation5 + $0xda0] sm:$0xff]
    %v493 = vld [vmem:[#allocation5 + $0xda8] sm:$0xff]
    %v494 = vld [vmem:[#allocation5 + $0xdb0] sm:$0xff]
    %v495 = vld [vmem:[#allocation5 + $0xdb8] sm:$0xff]
    %v496 = vld [vmem:[#allocation5 + $0xdc0] sm:$0xff]
    %v497 = vld [vmem:[#allocation5 + $0xdc8] sm:$0xff]
    %v498 = vld [vmem:[#allocation5 + $0xdd0] sm:$0xff]
    %v499 = vld [vmem:[#allocation5 + $0xdd8] sm:$0xff]
    %v500 = vld [vmem:[#allocation5 + $0xde0] sm:$0xff]
    %v501 = vld [vmem:[#allocation5 + $0xde8] sm:$0xff]
    %v502 = vld [vmem:[#allocation5 + $0xdf0] sm:$0xff]
    %v503 = vld [vmem:[#allocation5 + $0xdf8] sm:$0xff]
    %v504 = vld [vmem:[#allocation7] sm:$0xff]
    %v506 = vlaneseq
    %v507 = vshrl.u32 %v506, 7
    %v508 = vsub.s32 0, %v507
    %v509 = vrot.slane %v504, %v508
    %v510 = vlaneseq
    %v511 = vshrl.u32 %v510, 7
    %v512 = vsub.s32 1, %v511
    %v513 = vrot.slane %v504, %v512
    %v514 = vlaneseq
    %v515 = vshrl.u32 %v514, 7
    %v516 = vsub.s32 2, %v515
    %v517 = vrot.slane %v504, %v516
    %v518 = vlaneseq
    %v519 = vshrl.u32 %v518, 7
    %v520 = vsub.s32 3, %v519
    %v521 = vrot.slane %v504, %v520
    %v522 = vlaneseq
    %v523 = vshrl.u32 %v522, 7
    %v524 = vsub.s32 4, %v523
    %v525 = vrot.slane %v504, %v524
    %v526 = vlaneseq
    %v527 = vshrl.u32 %v526, 7
    %v528 = vsub.s32 5, %v527
    %v529 = vrot.slane %v504, %v528
    %v530 = vlaneseq
    %v531 = vshrl.u32 %v530, 7
    %v532 = vsub.s32 6, %v531
    %v533 = vrot.slane %v504, %v532
    %541 = vmatprep.subr.mxu0 %v57
    %542 = vmatpush1.msra.mxu0 %v56
    %543 = vmatprep.subr.mxu0 %v64
    %544 = vmatpush1.msra.mxu0 %v63
    %545 = vmatprep.subr.mxu0 %v71
    %546 = vmatpush1.msra.mxu0 %v70
    %547 = vmatprep.subr.mxu0 %v78
    %548 = vmatpush1.msra.mxu0 %v77
    %549 = vmatprep.subr.mxu0 %v85
    %550 = vmatpush1.msra.mxu0 %v84
    %551 = vmatprep.subr.mxu0 %v92
    %552 = vmatpush1.msra.mxu0 %v91
    %553 = vmatprep.subr.mxu0 %v99
    %554 = vmatpush1.msra.mxu0 %v98
    %555 = vmatprep.subr.mxu0 %v106
    %556 = vmatpush1.msra.mxu0 %v105
    %557 = vmatprep.subr.mxu0 %v113
    %558 = vmatpush1.msra.mxu0 %v112
    %559 = vmatprep.subr.mxu0 %v120
    %560 = vmatpush1.msra.mxu0 %v119
    %561 = vmatprep.subr.mxu0 %v127
    %562 = vmatpush1.msra.mxu0 %v126
    %563 = vmatprep.subr.mxu0 %v134
    %564 = vmatpush1.msra.mxu0 %v133
    %565 = vmatprep.subr.mxu0 %v141
    %566 = vmatpush1.msra.mxu0 %v140
    %567 = vmatprep.subr.mxu0 %v148
    %568 = vmatpush1.msra.mxu0 %v147
    %569 = vmatprep.subr.mxu0 %v155
    %570 = vmatpush1.msra.mxu0 %v154
    %571 = vmatprep.subr.mxu0 %v162
    %572 = vmatpush1.msra.mxu0 %v161
    %573 = vmatprep.subr.mxu0 %v169
    %574 = vmatpush1.msra.mxu0 %v168
    %575 = vmatprep.subr.mxu0 %v176
    %576 = vmatpush1.msra.mxu0 %v175
    %577 = vmatprep.subr.mxu0 %v183
    %578 = vmatpush1.msra.mxu0 %v182
    %579 = vmatprep.subr.mxu0 %v190
    %580 = vmatpush1.msra.mxu0 %v189
    %581 = vmatprep.subr.mxu0 %v197
    %582 = vmatpush1.msra.mxu0 %v196
    %583 = vmatprep.subr.mxu0 %v204
    %584 = vmatpush1.msra.mxu0 %v203
    %585 = vmatprep.subr.mxu0 %v211
    %586 = vmatpush1.msra.mxu0 %v210
    %587 = vmatprep.subr.mxu0 %v218
    %588 = vmatpush1.msra.mxu0 %v217
    %589 = vmatprep.subr.mxu0 %v225
    %590 = vmatpush1.msra.mxu0 %v224
    %591 = vmatprep.subr.mxu0 %v232
    %592 = vmatpush1.msra.mxu0 %v231
    %593 = vmatprep.subr.mxu0 %v239
    %594 = vmatpush1.msra.mxu0 %v238
    %595 = vmatprep.subr.mxu0 %v246
    %596 = vmatpush1.msra.mxu0 %v245
    %597 = vmatprep.subr.mxu0 %v253
    %598 = vmatpush1.msra.mxu0 %v252
    %599 = vmatprep.subr.mxu0 %v260
    %600 = vmatpush1.msra.mxu0 %v259
    %601 = vmatprep.subr.mxu0 %v267
    %602 = vmatpush1.msra.mxu0 %v266
    %603 = vmatprep.subr.mxu0 %v274
    %604 = vmatpush1.msra.mxu0 %v273
    %605 = vmatprep.mubr.f32.mxu0 %v53
    %606 = vmatmul.mubr.f32.gmra.mrb[0].mxu0 %v52
    %v607 = vpop.f32.mrb[0].mxu0
    %v608 = vadd.f32 %v509, %v607
    %v609 = vpop.f32.mrb[0].mxu0
    %v610 = vadd.f32 %v513, %v609
    %611 = vdwg.mxu0
    %612 = vmatprep.subr.mxu0 %v281
    %613 = vmatpush1.msra.mxu0 %v280
    %614 = vmatprep.subr.mxu0 %v288
    %615 = vmatpush1.msra.mxu0 %v287
    %616 = vmatprep.subr.mxu0 %v295
    %617 = vmatpush1.msra.mxu0 %v294
    %618 = vmatprep.subr.mxu0 %v302
    %619 = vmatpush1.msra.mxu0 %v301
    %620 = vmatprep.subr.mxu0 %v309
    %621 = vmatpush1.msra.mxu0 %v308
    %622 = vmatprep.subr.mxu0 %v316
    %623 = vmatpush1.msra.mxu0 %v315
    %624 = vmatprep.subr.mxu0 %v323
    %625 = vmatpush1.msra.mxu0 %v322
    %626 = vmatprep.subr.mxu0 %v330
    %627 = vmatpush1.msra.mxu0 %v329
    %628 = vmatprep.subr.mxu0 %v337
    %629 = vmatpush1.msra.mxu0 %v336
    %630 = vmatprep.subr.mxu0 %v344
    %631 = vmatpush1.msra.mxu0 %v343
    %632 = vmatprep.subr.mxu0 %v351
    %633 = vmatpush1.msra.mxu0 %v350
    %634 = vmatprep.subr.mxu0 %v358
    %635 = vmatpush1.msra.mxu0 %v357
    %636 = vmatprep.subr.mxu0 %v365
    %637 = vmatpush1.msra.mxu0 %v364
    %638 = vmatprep.subr.mxu0 %v372
    %639 = vmatpush1.msra.mxu0 %v371
    %640 = vmatprep.subr.mxu0 %v379
    %641 = vmatpush1.msra.mxu0 %v378
    %642 = vmatprep.subr.mxu0 %v386
    %643 = vmatpush1.msra.mxu0 %v385
    %644 = vmatprep.subr.mxu0 %v393
    %645 = vmatpush1.msra.mxu0 %v392
    %646 = vmatprep.subr.mxu0 %v400
    %647 = vmatpush1.msra.mxu0 %v399
    %648 = vmatprep.subr.mxu0 %v407
    %649 = vmatpush1.msra.mxu0 %v406
    %650 = vmatprep.subr.mxu0 %v414
    %651 = vmatpush1.msra.mxu0 %v413
    %652 = vmatprep.subr.mxu0 %v421
    %653 = vmatpush1.msra.mxu0 %v420
    %654 = vmatprep.subr.mxu0 %v428
    %655 = vmatpush1.msra.mxu0 %v427
    %656 = vmatprep.subr.mxu0 %v435
    %657 = vmatpush1.msra.mxu0 %v434
    %658 = vmatprep.subr.mxu0 %v442
    %659 = vmatpush1.msra.mxu0 %v441
    %660 = vmatprep.subr.mxu0 %v449
    %661 = vmatpush1.msra.mxu0 %v448
    %662 = vmatprep.subr.mxu0 %v456
    %663 = vmatpush1.msra.mxu0 %v455
    %664 = vmatprep.subr.mxu0 %v463
    %665 = vmatpush1.msra.mxu0 %v462
    %666 = vmatprep.subr.mxu0 %v470
    %667 = vmatpush1.msra.mxu0 %v469
    %668 = vmatprep.subr.mxu0 %v477
    %669 = vmatpush1.msra.mxu0 %v476
    %670 = vmatprep.subr.mxu0 %v484
    %671 = vmatpush1.msra.mxu0 %v483
    %672 = vmatprep.subr.mxu0 %v491
    %673 = vmatpush1.msra.mxu0 %v490
    %674 = vmatprep.subr.mxu0 %v498
    %675 = vmatpush1.msra.mxu0 %v497
    %676 = vmatprep.mubr.f32.mxu0 %v55
    %677 = vmatmul.mubr.f32.gmra.mrb[0].mxu0 %v54
    %v678 = vpop.f32.mrb[0].mxu0
    %v679 = vadd.f32 %v608, %v678
    %v680 = vpop.f32.mrb[0].mxu0
    %v681 = vadd.f32 %v610, %v680
    %682 = vdwg.mxu0
    %683 = vmatprep.subr.mxu0 %v59
    %684 = vmatpush1.msra.mxu0 %v58
    %685 = vmatprep.subr.mxu0 %v66
    %686 = vmatpush1.msra.mxu0 %v65
    %687 = vmatprep.subr.mxu0 %v73
    %688 = vmatpush1.msra.mxu0 %v72
    %689 = vmatprep.subr.mxu0 %v80
    %690 = vmatpush1.msra.mxu0 %v79
    %691 = vmatprep.subr.mxu0 %v87
    %692 = vmatpush1.msra.mxu0 %v86
    %693 = vmatprep.subr.mxu0 %v94
    %694 = vmatpush1.msra.mxu0 %v93
    %695 = vmatprep.subr.mxu0 %v101
    %696 = vmatpush1.msra.mxu0 %v100
    %697 = vmatprep.subr.mxu0 %v108
    %698 = vmatpush1.msra.mxu0 %v107
    %699 = vmatprep.subr.mxu0 %v115
    %700 = vmatpush1.msra.mxu0 %v114
    %701 = vmatprep.subr.mxu0 %v122
    %702 = vmatpush1.msra.mxu0 %v121
    %703 = vmatprep.subr.mxu0 %v129
    %704 = vmatpush1.msra.mxu0 %v128
    %705 = vmatprep.subr.mxu0 %v136
    %706 = vmatpush1.msra.mxu0 %v135
    %707 = vmatprep.subr.mxu0 %v143
    %708 = vmatpush1.msra.mxu0 %v142
    %709 = vmatprep.subr.mxu0 %v150
    %710 = vmatpush1.msra.mxu0 %v149
    %711 = vmatprep.subr.mxu0 %v157
    %712 = vmatpush1.msra.mxu0 %v156
    %713 = vmatprep.subr.mxu0 %v164
    %714 = vmatpush1.msra.mxu0 %v163
    %715 = vmatprep.subr.mxu0 %v171
    %716 = vmatpush1.msra.mxu0 %v170
    %717 = vmatprep.subr.mxu0 %v178
    %718 = vmatpush1.msra.mxu0 %v177
    %719 = vmatprep.subr.mxu0 %v185
    %720 = vmatpush1.msra.mxu0 %v184
    %721 = vmatprep.subr.mxu0 %v192
    %722 = vmatpush1.msra.mxu0 %v191
    %723 = vmatprep.subr.mxu0 %v199
    %724 = vmatpush1.msra.mxu0 %v198
    %725 = vmatprep.subr.mxu0 %v206
    %726 = vmatpush1.msra.mxu0 %v205
    %727 = vmatprep.subr.mxu0 %v213
    %728 = vmatpush1.msra.mxu0 %v212
    %729 = vmatprep.subr.mxu0 %v220
    %730 = vmatpush1.msra.mxu0 %v219
    %731 = vmatprep.subr.mxu0 %v227
    %732 = vmatpush1.msra.mxu0 %v226
    %733 = vmatprep.subr.mxu0 %v234
    %734 = vmatpush1.msra.mxu0 %v233
    %735 = vmatprep.subr.mxu0 %v241
    %736 = vmatpush1.msra.mxu0 %v240
    %737 = vmatprep.subr.mxu0 %v248
    %738 = vmatpush1.msra.mxu0 %v247
    %739 = vmatprep.subr.mxu0 %v255
    %740 = vmatpush1.msra.mxu0 %v254
    %741 = vmatprep.subr.mxu0 %v262
    %742 = vmatpush1.msra.mxu0 %v261
    %743 = vmatprep.subr.mxu0 %v269
    %744 = vmatpush1.msra.mxu0 %v268
    %745 = vmatprep.subr.mxu0 %v276
    %746 = vmatpush1.msra.mxu0 %v275
    %747 = vmatprep.mubr.f32.mxu0 %v53
    %748 = vmatmul.mubr.f32.gmra.mrb[0].mxu0 %v52
    %v749 = vpop.f32.mrb[0].mxu0
    %v750 = vadd.f32 %v517, %v749
    %v751 = vpop.f32.mrb[0].mxu0
    %v752 = vadd.f32 %v521, %v751
    %753 = vdwg.mxu0
    %754 = vmatprep.subr.mxu0 %v283
    %755 = vmatpush1.msra.mxu0 %v282
    %756 = vmatprep.subr.mxu0 %v290
    %757 = vmatpush1.msra.mxu0 %v289
    %758 = vmatprep.subr.mxu0 %v297
    %759 = vmatpush1.msra.mxu0 %v296
    %760 = vmatprep.subr.mxu0 %v304
    %761 = vmatpush1.msra.mxu0 %v303
    %762 = vmatprep.subr.mxu0 %v311
    %763 = vmatpush1.msra.mxu0 %v310
    %764 = vmatprep.subr.mxu0 %v318
    %765 = vmatpush1.msra.mxu0 %v317
    %766 = vmatprep.subr.mxu0 %v325
    %767 = vmatpush1.msra.mxu0 %v324
    %768 = vmatprep.subr.mxu0 %v332
    %769 = vmatpush1.msra.mxu0 %v331
    %770 = vmatprep.subr.mxu0 %v339
    %771 = vmatpush1.msra.mxu0 %v338
    %772 = vmatprep.subr.mxu0 %v346
    %773 = vmatpush1.msra.mxu0 %v345
    %774 = vmatprep.subr.mxu0 %v353
    %775 = vmatpush1.msra.mxu0 %v352
    %776 = vmatprep.subr.mxu0 %v360
    %777 = vmatpush1.msra.mxu0 %v359
    %778 = vmatprep.subr.mxu0 %v367
    %779 = vmatpush1.msra.mxu0 %v366
    %780 = vmatprep.subr.mxu0 %v374
    %781 = vmatpush1.msra.mxu0 %v373
    %782 = vmatprep.subr.mxu0 %v381
    %783 = vmatpush1.msra.mxu0 %v380
    %784 = vmatprep.subr.mxu0 %v388
    %785 = vmatpush1.msra.mxu0 %v387
    %786 = vmatprep.subr.mxu0 %v395
    %787 = vmatpush1.msra.mxu0 %v394
    %788 = vmatprep.subr.mxu0 %v402
    %789 = vmatpush1.msra.mxu0 %v401
    %790 = vmatprep.subr.mxu0 %v409
    %791 = vmatpush1.msra.mxu0 %v408
    %792 = vmatprep.subr.mxu0 %v416
    %793 = vmatpush1.msra.mxu0 %v415
    %794 = vmatprep.subr.mxu0 %v423
    %795 = vmatpush1.msra.mxu0 %v422
    %796 = vmatprep.subr.mxu0 %v430
    %797 = vmatpush1.msra.mxu0 %v429
    %798 = vmatprep.subr.mxu0 %v437
    %799 = vmatpush1.msra.mxu0 %v436
    %800 = vmatprep.subr.mxu0 %v444
    %801 = vmatpush1.msra.mxu0 %v443
    %802 = vmatprep.subr.mxu0 %v451
    %803 = vmatpush1.msra.mxu0 %v450
    %804 = vmatprep.subr.mxu0 %v458
    %805 = vmatpush1.msra.mxu0 %v457
    %806 = vmatprep.subr.mxu0 %v465
    %807 = vmatpush1.msra.mxu0 %v464
    %808 = vmatprep.subr.mxu0 %v472
    %809 = vmatpush1.msra.mxu0 %v471
    %810 = vmatprep.subr.mxu0 %v479
    %811 = vmatpush1.msra.mxu0 %v478
    %812 = vmatprep.subr.mxu0 %v486
    %813 = vmatpush1.msra.mxu0 %v485
    %814 = vmatprep.subr.mxu0 %v493
    %815 = vmatpush1.msra.mxu0 %v492
    %816 = vmatprep.subr.mxu0 %v500
    %817 = vmatpush1.msra.mxu0 %v499
    %818 = vmatprep.mubr.f32.mxu0 %v55
    %819 = vmatmul.mubr.f32.gmra.mrb[0].mxu0 %v54
    %v820 = vpop.f32.mrb[0].mxu0
    %v821 = vadd.f32 %v750, %v820
    %v822 = vpop.f32.mrb[0].mxu0
    %v823 = vadd.f32 %v752, %v822
    %824 = vdwg.mxu0
    %825 = vmatprep.subr.mxu0 %v61
    %826 = vmatpush1.msra.mxu0 %v60
    %827 = vmatprep.subr.mxu0 %v68
    %828 = vmatpush1.msra.mxu0 %v67
    %829 = vmatprep.subr.mxu0 %v75
    %830 = vmatpush1.msra.mxu0 %v74
    %831 = vmatprep.subr.mxu0 %v82
    %832 = vmatpush1.msra.mxu0 %v81
    %833 = vmatprep.subr.mxu0 %v89
    %834 = vmatpush1.msra.mxu0 %v88
    %835 = vmatprep.subr.mxu0 %v96
    %836 = vmatpush1.msra.mxu0 %v95
    %837 = vmatprep.subr.mxu0 %v103
    %838 = vmatpush1.msra.mxu0 %v102
    %839 = vmatprep.subr.mxu0 %v110
    %840 = vmatpush1.msra.mxu0 %v109
    %841 = vmatprep.subr.mxu0 %v117
    %842 = vmatpush1.msra.mxu0 %v116
    %843 = vmatprep.subr.mxu0 %v124
    %844 = vmatpush1.msra.mxu0 %v123
    %845 = vmatprep.subr.mxu0 %v131
    %846 = vmatpush1.msra.mxu0 %v130
    %847 = vmatprep.subr.mxu0 %v138
    %848 = vmatpush1.msra.mxu0 %v137
    %849 = vmatprep.subr.mxu0 %v145
    %850 = vmatpush1.msra.mxu0 %v144
    %851 = vmatprep.subr.mxu0 %v152
    %852 = vmatpush1.msra.mxu0 %v151
    %853 = vmatprep.subr.mxu0 %v159
    %854 = vmatpush1.msra.mxu0 %v158
    %855 = vmatprep.subr.mxu0 %v166
    %856 = vmatpush1.msra.mxu0 %v165
    %857 = vmatprep.subr.mxu0 %v173
    %858 = vmatpush1.msra.mxu0 %v172
    %859 = vmatprep.subr.mxu0 %v180
    %860 = vmatpush1.msra.mxu0 %v179
    %861 = vmatprep.subr.mxu0 %v187
    %862 = vmatpush1.msra.mxu0 %v186
    %863 = vmatprep.subr.mxu0 %v194
    %864 = vmatpush1.msra.mxu0 %v193
    %865 = vmatprep.subr.mxu0 %v201
    %866 = vmatpush1.msra.mxu0 %v200
    %867 = vmatprep.subr.mxu0 %v208
    %868 = vmatpush1.msra.mxu0 %v207
    %869 = vmatprep.subr.mxu0 %v215
    %870 = vmatpush1.msra.mxu0 %v214
    %871 = vmatprep.subr.mxu0 %v222
    %872 = vmatpush1.msra.mxu0 %v221
    %873 = vmatprep.subr.mxu0 %v229
    %874 = vmatpush1.msra.mxu0 %v228
    %875 = vmatprep.subr.mxu0 %v236
    %876 = vmatpush1.msra.mxu0 %v235
    %877 = vmatprep.subr.mxu0 %v243
    %878 = vmatpush1.msra.mxu0 %v242
    %879 = vmatprep.subr.mxu0 %v250
    %880 = vmatpush1.msra.mxu0 %v249
    %881 = vmatprep.subr.mxu0 %v257
    %882 = vmatpush1.msra.mxu0 %v256
    %883 = vmatprep.subr.mxu0 %v264
    %884 = vmatpush1.msra.mxu0 %v263
    %885 = vmatprep.subr.mxu0 %v271
    %886 = vmatpush1.msra.mxu0 %v270
    %887 = vmatprep.subr.mxu0 %v278
    %888 = vmatpush1.msra.mxu0 %v277
    %889 = vmatprep.mubr.f32.mxu0 %v53
    %890 = vmatmul.mubr.f32.gmra.mrb[0].mxu0 %v52
    %v891 = vpop.f32.mrb[0].mxu0
    %v892 = vadd.f32 %v525, %v891
    %v893 = vpop.f32.mrb[0].mxu0
    %v894 = vadd.f32 %v529, %v893
    %895 = vdwg.mxu0
    %896 = vmatprep.subr.mxu0 %v285
    %897 = vmatpush1.msra.mxu0 %v284
    %898 = vmatprep.subr.mxu0 %v292
    %899 = vmatpush1.msra.mxu0 %v291
    %900 = vmatprep.subr.mxu0 %v299
    %901 = vmatpush1.msra.mxu0 %v298
    %902 = vmatprep.subr.mxu0 %v306
    %903 = vmatpush1.msra.mxu0 %v305
    %904 = vmatprep.subr.mxu0 %v313
    %905 = vmatpush1.msra.mxu0 %v312
    %906 = vmatprep.subr.mxu0 %v320
    %907 = vmatpush1.msra.mxu0 %v319
    %908 = vmatprep.subr.mxu0 %v327
    %909 = vmatpush1.msra.mxu0 %v326
    %910 = vmatprep.subr.mxu0 %v334
    %911 = vmatpush1.msra.mxu0 %v333
    %912 = vmatprep.subr.mxu0 %v341
    %913 = vmatpush1.msra.mxu0 %v340
    %914 = vmatprep.subr.mxu0 %v348
    %915 = vmatpush1.msra.mxu0 %v347
    %916 = vmatprep.subr.mxu0 %v355
    %917 = vmatpush1.msra.mxu0 %v354
    %918 = vmatprep.subr.mxu0 %v362
    %919 = vmatpush1.msra.mxu0 %v361
    %920 = vmatprep.subr.mxu0 %v369
    %921 = vmatpush1.msra.mxu0 %v368
    %922 = vmatprep.subr.mxu0 %v376
    %923 = vmatpush1.msra.mxu0 %v375
    %924 = vmatprep.subr.mxu0 %v383
    %925 = vmatpush1.msra.mxu0 %v382
    %926 = vmatprep.subr.mxu0 %v390
    %927 = vmatpush1.msra.mxu0 %v389
    %928 = vmatprep.subr.mxu0 %v397
    %929 = vmatpush1.msra.mxu0 %v396
    %930 = vmatprep.subr.mxu0 %v404
    %931 = vmatpush1.msra.mxu0 %v403
    %932 = vmatprep.subr.mxu0 %v411
    %933 = vmatpush1.msra.mxu0 %v410
    %934 = vmatprep.subr.mxu0 %v418
    %935 = vmatpush1.msra.mxu0 %v417
    %936 = vmatprep.subr.mxu0 %v425
    %937 = vmatpush1.msra.mxu0 %v424
    %938 = vmatprep.subr.mxu0 %v432
    %939 = vmatpush1.msra.mxu0 %v431
    %940 = vmatprep.subr.mxu0 %v439
    %941 = vmatpush1.msra.mxu0 %v438
    %942 = vmatprep.subr.mxu0 %v446
    %943 = vmatpush1.msra.mxu0 %v445
    %944 = vmatprep.subr.mxu0 %v453
    %945 = vmatpush1.msra.mxu0 %v452
    %946 = vmatprep.subr.mxu0 %v460
    %947 = vmatpush1.msra.mxu0 %v459
    %948 = vmatprep.subr.mxu0 %v467
    %949 = vmatpush1.msra.mxu0 %v466
    %950 = vmatprep.subr.mxu0 %v474
    %951 = vmatpush1.msra.mxu0 %v473
    %952 = vmatprep.subr.mxu0 %v481
    %953 = vmatpush1.msra.mxu0 %v480
    %954 = vmatprep.subr.mxu0 %v488
    %955 = vmatpush1.msra.mxu0 %v487
    %956 = vmatprep.subr.mxu0 %v495
    %957 = vmatpush1.msra.mxu0 %v494
    %958 = vmatprep.subr.mxu0 %v502
    %959 = vmatpush1.msra.mxu0 %v501
    %960 = vmatprep.mubr.f32.mxu0 %v55
    %961 = vmatmul.mubr.f32.gmra.mrb[0].mxu0 %v54
    %v962 = vpop.f32.mrb[0].mxu0
    %v963 = vadd.f32 %v892, %v962
    %v964 = vpop.f32.mrb[0].mxu0
    %v965 = vadd.f32 %v894, %v964
    %966 = vdwg.mxu0
    %967 = vmatprep.subr.mxu0 0.0
    %968 = vmatpush1.msra.mxu0 %v62
    %969 = vmatprep.subr.mxu0 0.0
    %970 = vmatpush1.msra.mxu0 %v69
    %971 = vmatprep.subr.mxu0 0.0
    %972 = vmatpush1.msra.mxu0 %v76
    %973 = vmatprep.subr.mxu0 0.0
    %974 = vmatpush1.msra.mxu0 %v83
    %975 = vmatprep.subr.mxu0 0.0
    %976 = vmatpush1.msra.mxu0 %v90
    %977 = vmatprep.subr.mxu0 0.0
    %978 = vmatpush1.msra.mxu0 %v97
    %979 = vmatprep.subr.mxu0 0.0
    %980 = vmatpush1.msra.mxu0 %v104
    %981 = vmatprep.subr.mxu0 0.0
    %982 = vmatpush1.msra.mxu0 %v111
    %983 = vmatprep.subr.mxu0 0.0
    %984 = vmatpush1.msra.mxu0 %v118
    %985 = vmatprep.subr.mxu0 0.0
    %986 = vmatpush1.msra.mxu0 %v125
    %987 = vmatprep.subr.mxu0 0.0
    %988 = vmatpush1.msra.mxu0 %v132
    %989 = vmatprep.subr.mxu0 0.0
    %990 = vmatpush1.msra.mxu0 %v139
    %991 = vmatprep.subr.mxu0 0.0
    %992 = vmatpush1.msra.mxu0 %v146
    %993 = vmatprep.subr.mxu0 0.0
    %994 = vmatpush1.msra.mxu0 %v153
    %995 = vmatprep.subr.mxu0 0.0
    %996 = vmatpush1.msra.mxu0 %v160
    %997 = vmatprep.subr.mxu0 0.0
    %998 = vmatpush1.msra.mxu0 %v167
    %999 = vmatprep.subr.mxu0 0.0
    %1000 = vmatpush1.msra.mxu0 %v174
    %1001 = vmatprep.subr.mxu0 0.0
    %1002 = vmatpush1.msra.mxu0 %v181
    %1003 = vmatprep.subr.mxu0 0.0
    %1004 = vmatpush1.msra.mxu0 %v188
    %1005 = vmatprep.subr.mxu0 0.0
    %1006 = vmatpush1.msra.mxu0 %v195
    %1007 = vmatprep.subr.mxu0 0.0
    %1008 = vmatpush1.msra.mxu0 %v202
    %1009 = vmatprep.subr.mxu0 0.0
    %1010 = vmatpush1.msra.mxu0 %v209
    %1011 = vmatprep.subr.mxu0 0.0
    %1012 = vmatpush1.msra.mxu0 %v216
    %1013 = vmatprep.subr.mxu0 0.0
    %1014 = vmatpush1.msra.mxu0 %v223
    %1015 = vmatprep.subr.mxu0 0.0
    %1016 = vmatpush1.msra.mxu0 %v230
    %1017 = vmatprep.subr.mxu0 0.0
    %1018 = vmatpush1.msra.mxu0 %v237
    %1019 = vmatprep.subr.mxu0 0.0
    %1020 = vmatpush1.msra.mxu0 %v244
    %1021 = vmatprep.subr.mxu0 0.0
    %1022 = vmatpush1.msra.mxu0 %v251
    %1023 = vmatprep.subr.mxu0 0.0
    %1024 = vmatpush1.msra.mxu0 %v258
    %1025 = vmatprep.subr.mxu0 0.0
    %1026 = vmatpush1.msra.mxu0 %v265
    %1027 = vmatprep.subr.mxu0 0.0
    %1028 = vmatpush1.msra.mxu0 %v272
    %1029 = vmatprep.subr.mxu0 0.0
    %1030 = vmatpush1.msra.mxu0 %v279
    %1031 = vmatprep.mubr.f32.mxu0 %v53
    %1032 = vmatmul.mubr.f32.gmra.mrb[0].mxu0 %v52
    %v1033 = vpop.f32.mrb[0].mxu0
    %v1034 = vadd.f32 %v533, %v1033
    %v1035 = vpop.f32.mrb[0].mxu0
    %1036 = vdwg.mxu0
    %1037 = vmatprep.subr.mxu0 0.0
    %1038 = vmatpush1.msra.mxu0 %v286
    %1039 = vmatprep.subr.mxu0 0.0
    %1040 = vmatpush1.msra.mxu0 %v293
    %1041 = vmatprep.subr.mxu0 0.0
    %1042 = vmatpush1.msra.mxu0 %v300
    %1043 = vmatprep.subr.mxu0 0.0
    %1044 = vmatpush1.msra.mxu0 %v307
    %1045 = vmatprep.subr.mxu0 0.0
    %1046 = vmatpush1.msra.mxu0 %v314
    %1047 = vmatprep.subr.mxu0 0.0
    %1048 = vmatpush1.msra.mxu0 %v321
    %1049 = vmatprep.subr.mxu0 0.0
    %1050 = vmatpush1.msra.mxu0 %v328
    %1051 = vmatprep.subr.mxu0 0.0
    %1052 = vmatpush1.msra.mxu0 %v335
    %1053 = vmatprep.subr.mxu0 0.0
    %1054 = vmatpush1.msra.mxu0 %v342
    %1055 = vmatprep.subr.mxu0 0.0
    %1056 = vmatpush1.msra.mxu0 %v349
    %1057 = vmatprep.subr.mxu0 0.0
    %1058 = vmatpush1.msra.mxu0 %v356
    %1059 = vmatprep.subr.mxu0 0.0
    %1060 = vmatpush1.msra.mxu0 %v363
    %1061 = vmatprep.subr.mxu0 0.0
    %1062 = vmatpush1.msra.mxu0 %v370
    %1063 = vmatprep.subr.mxu0 0.0
    %1064 = vmatpush1.msra.mxu0 %v377
    %1065 = vmatprep.subr.mxu0 0.0
    %1066 = vmatpush1.msra.mxu0 %v384
    %1067 = vmatprep.subr.mxu0 0.0
    %1068 = vmatpush1.msra.mxu0 %v391
    %1069 = vmatprep.subr.mxu0 0.0
    %1070 = vmatpush1.msra.mxu0 %v398
    %1071 = vmatprep.subr.mxu0 0.0
    %1072 = vmatpush1.msra.mxu0 %v405
    %1073 = vmatprep.subr.mxu0 0.0
    %1074 = vmatpush1.msra.mxu0 %v412
    %1075 = vmatprep.subr.mxu0 0.0
    %1076 = vmatpush1.msra.mxu0 %v419
    %1077 = vmatprep.subr.mxu0 0.0
    %1078 = vmatpush1.msra.mxu0 %v426
    %1079 = vmatprep.subr.mxu0 0.0
    %1080 = vmatpush1.msra.mxu0 %v433
    %1081 = vmatprep.subr.mxu0 0.0
    %1082 = vmatpush1.msra.mxu0 %v440
    %1083 = vmatprep.subr.mxu0 0.0
    %1084 = vmatpush1.msra.mxu0 %v447
    %1085 = vmatprep.subr.mxu0 0.0
    %1086 = vmatpush1.msra.mxu0 %v454
    %1087 = vmatprep.subr.mxu0 0.0
    %1088 = vmatpush1.msra.mxu0 %v461
    %1089 = vmatprep.subr.mxu0 0.0
    %1090 = vmatpush1.msra.mxu0 %v468
    %1091 = vmatprep.subr.mxu0 0.0
    %1092 = vmatpush1.msra.mxu0 %v475
    %1093 = vmatprep.subr.mxu0 0.0
    %1094 = vmatpush1.msra.mxu0 %v482
    %1095 = vmatprep.subr.mxu0 0.0
    %1096 = vmatpush1.msra.mxu0 %v489
    %1097 = vmatprep.subr.mxu0 0.0
    %1098 = vmatpush1.msra.mxu0 %v496
    %1099 = vmatprep.subr.mxu0 0.0
    %1100 = vmatpush1.msra.mxu0 %v503
    %1101 = vmatprep.mubr.f32.mxu0 %v55
    %1102 = vmatmul.mubr.f32.gmra.mrb[0].mxu0 %v54
    %v1103 = vpop.f32.mrb[0].mxu0
    %v1104 = vadd.f32 %v1034, %v1103
    %v1105 = vpop.f32.mrb[0].mxu0
    %1106 = vdwg.mxu0
    %1107 = vst [vmem:[#allocation8] sm:$0xff] %v679
    %1108 = vst [vmem:[#allocation8 + $0x8] sm:$0xff] %v681
    %1109 = vst [vmem:[#allocation8 + $0x10] sm:$0xff] %v821
    %1110 = vst [vmem:[#allocation8 + $0x18] sm:$0xff] %v823
    %1111 = vst [vmem:[#allocation8 + $0x20] sm:$0xff] %v963
    %1112 = vst [vmem:[#allocation8 + $0x28] sm:$0xff] %v965
    %1113 = vst [vmem:[#allocation8 + $0x30] sm:$0xff] %v1104
    // Predicated region
    $region26: #{forward.1} parent=1 // pred_check
      _
    $region27: #{forward.1} parent=1 // pred_check_branch
      %1115 = sbr.rel (0) target = $region29
    $region28: #{forward.1} parent=1 // pred_region
      %s1117 = ssub.s32 896, 896
      %1118 = vsyncadd [#allocation4], %s1117
      %s1120 = sshll.u32 [#allocation8], 4
      %s1121 = int_to_ptr.vmem [resolvable:$true] %s1120
      %1123 = dma.vmem_to_hbm [thread:$0]  %s1121, 896, %s3, [#allocation4]
    $region29: #{forward.1} parent=1 // pred_fallthru
      _
    // Predicated region
    $region30: #{forward.1} parent=1 // pred_check
      _
    $region31: #{forward.1} parent=1 // pred_check_branch
      %1125 = sbr.rel (0) target = $region33
    $region32: #{forward.1} parent=1 // pred_region
      %1126 = dma.done [#allocation4], 896
    $region33: #{forward.1} parent=1 // pred_fallthru
      _
    %1127 = vsyncpa [#allocation3], 1
    %1128 = vsyncpa [#allocation6], 1
    %1129 = vsyncpa [#allocation4], 1

</llo_original>
